<compile_context>
chip_gen: v7x
topology: tpu7x:2x2x1
jax: 0.10.0
libtpu: 0.0.40
codegen_flags: <defaults>
</compile_context>

<pallas_src>
import jax
import jax.numpy as jnp
from jax.experimental import pallas as pl
from jax.experimental.pallas import tpu as pltpu

LANES = 128
DEFAULT_TILE_BYTES = 2 * 1024 * 1024     # ~2 MiB tiles: 85%+ of HBM roofline, fits all gens
FAST_PATH_BYTES = 2 * 1024 * 1024        # whole-array-resident fused path threshold
VMEM_LIMIT_BYTES = 32 * 1024 * 1024      # safe scoped-VMEM on v5e/v6e/v7x


def _round_up(a: int, b: int) -> int:
    return (a + b - 1) // b * b


def _as_2d(x: jax.Array) -> jax.Array:
    """Copy-less 2-D view. Prefer a free lane-dense (n//128, 128) re-view when the
    natural trailing dim is lane-sparse / misaligned / degenerate."""
    n = int(x.size)
    last = int(x.shape[-1]) if x.ndim else 1
    rows = n // last
    if n % LANES == 0 and (last % LANES != 0 or rows < 8):
        return x.reshape(n // LANES, LANES)
    # TODO(synk): a single enormous row (rows small, last dim >> VMEM, n % 128 != 0)
    # would need an extra lane-split tiling path; not implemented here.
    return x.reshape(rows, last)


# --------------------------------------------------------------------------- #
# Fast path: whole array resident in VMEM, single fused kernel.
# --------------------------------------------------------------------------- #
def _fused_standardize(x2d: jax.Array, n: int, out_dtype) -> jax.Array:
    rows, d = x2d.shape

    def kernel(x_ref, o_ref):
        xt = x_ref[...].astype(jnp.float32)                   # native-dtype load
        s_lane = jnp.sum(xt, axis=0, keepdims=True)           # (1, d) sublane reduce
        sq_lane = jnp.sum(xt * xt, axis=0, keepdims=True)
        s = jnp.sum(s_lane)                                    # cross-lane (XLU)
        sq = jnp.sum(sq_lane)
        mean = s / n
        var = jnp.maximum((sq - s * mean) / (n - 1), 0.0)      # clamp: cancellation
        inv = jax.lax.rsqrt(var)                               # EUP
        o_ref[...] = (x_ref[...].astype(jnp.float32) * inv).astype(o_ref.dtype)

    return pl.pallas_call(
        kernel,
        out_shape=jax.ShapeDtypeStruct((rows, d), out_dtype),
        grid=(1,),
        in_specs=[pl.BlockSpec((rows, d), lambda i: (0, 0))],   # block == full array
        out_specs=pl.BlockSpec((rows, d), lambda i: (0, 0)),
        compiler_params=pltpu.CompilerParams(
            dimension_semantics=("arbitrary",),
            vmem_limit_bytes=VMEM_LIMIT_BYTES),
    )(x2d)


# --------------------------------------------------------------------------- #
# Tiled path: parallel partial-sum pass + parallel normalize pass.
# --------------------------------------------------------------------------- #
def _tiled_standardize(x2d: jax.Array, n: int, out_dtype, tile_bytes: int) -> jax.Array:
    rows, d = x2d.shape
    itemsize = jnp.dtype(x2d.dtype).itemsize
    pack = max(8, 8 * (4 // max(1, itemsize)))       # sublane pack: 8 f32 / 16 bf16 / 32 i8
    tm = max(pack, (tile_bytes // (d * itemsize)) // pack * pack)
    tm = min(tm, _round_up(rows, pack))
    num_tiles = pl.cdiv(rows, tm)

    # ---- pass 1: per-tile per-lane partials (megacore-parallel, no serialization)
    def reduce_kernel(x_ref, psum_ref, psq_ref):
        i = pl.program_id(0)
        xt = x_ref[...].astype(jnp.float32)                       # (tm, d) f32 in-reg
        valid = rows - i * tm                                      # tail-tile row count
        rid = jax.lax.broadcasted_iota(jnp.int32, (tm, d), 0)
        xt = jnp.where(rid < valid, xt, 0.0)                       # mask padded rows
        s = jnp.sum(xt, axis=0, keepdims=True)                     # (1, d)
        sq = jnp.sum(xt * xt, axis=0, keepdims=True)               # (1, d)
        sub0 = jax.lax.broadcasted_iota(jnp.int32, (8, d), 0) == 0
        psum_ref[0] = jnp.where(sub0, s, 0.0)                      # row 0 = partial, rest 0
        psq_ref[0] = jnp.where(sub0, sq, 0.0)

    psum, psq = pl.pallas_call(
        reduce_kernel,
        out_shape=(jax.ShapeDtypeStruct((num_tiles, 8, d), jnp.float32),
                   jax.ShapeDtypeStruct((num_tiles, 8, d), jnp.float32)),
        grid=(num_tiles,),
        in_specs=[pl.BlockSpec((tm, d), lambda i: (i, 0))],
        out_specs=(pl.BlockSpec((1, 8, d), lambda i: (i, 0, 0)),
                   pl.BlockSpec((1, 8, d), lambda i: (i, 0, 0))),
        compiler_params=pltpu.CompilerParams(
            dimension_semantics=("parallel",),
            vmem_limit_bytes=VMEM_LIMIT_BYTES),
    )(x2d)

    # tiny final combine (num_tiles*8*d floats) in plain XLA: mean/var/rsqrt.
    s = jnp.sum(psum, dtype=jnp.float32)
    sq = jnp.sum(psq, dtype=jnp.float32)
    mean = s / n
    var = jnp.maximum((sq - s * mean) / (n - 1), 0.0)              # clamp: cancellation
    inv_std = jax.lax.rsqrt(var).reshape(1)                        # (1,) f32 -> SMEM

    # ---- pass 2: elementwise normalize, inv_std as SMEM scalar
    def normalize_kernel(inv_ref, x_ref, o_ref):
        inv = inv_ref[0]                                           # scalar splat
        o_ref[...] = (x_ref[...].astype(jnp.float32) * inv).astype(o_ref.dtype)

    y2d = pl.pallas_call(
        normalize_kernel,
        out_shape=jax.ShapeDtypeStruct((rows, d), out_dtype),
        grid=(num_tiles,),
        in_specs=[
            pl.BlockSpec(memory_space=pltpu.MemorySpace.SMEM),     # inv_std (1,) f32
            pl.BlockSpec((tm, d), lambda i: (i, 0)),               # x tile, native dtype
        ],
        out_specs=pl.BlockSpec((tm, d), lambda i: (i, 0)),
        compiler_params=pltpu.CompilerParams(
            dimension_semantics=("parallel",),
            vmem_limit_bytes=VMEM_LIMIT_BYTES),
    )(inv_std, x2d)
    return y2d


def standardize(x: jax.Array, *,
                tile_bytes: int = DEFAULT_TILE_BYTES,
                fast_path_bytes: int = FAST_PATH_BYTES) -> jax.Array:
    """X / X.std()  (torch default: unbiased std over all elements)."""
    orig_shape = x.shape
    orig_dtype = x.dtype
    n = int(x.size)
    assert n > 1, "std() with Bessel correction needs at least 2 elements"

    x2d = _as_2d(x)                                   # free reshape, no copy
    if n * jnp.dtype(orig_dtype).itemsize <= fast_path_bytes:
        y2d = _fused_standardize(x2d, n, orig_dtype)  # single HBM read + write
    else:
        y2d = _tiled_standardize(x2d, n, orig_dtype, tile_bytes)
    return y2d.reshape(orig_shape)                    # free reshape, no copy


def _reference(x: jax.Array) -> jax.Array:
    x32 = x.astype(jnp.float32)
    n = x32.size
    mean = jnp.mean(x32)
    var = jnp.sum((x32 - mean) ** 2) / (n - 1)
    return x32 / jnp.sqrt(var)


if __name__ == "__main__":
    # 1) the module's own example: torch.randn(2, 8)  -> fused VMEM-resident path
    x = jax.random.normal(jax.random.PRNGKey(0), (2, 8), dtype=jnp.float32)
    out = jax.block_until_ready(standardize(x))
    ref = _reference(x)
    assert out.shape == x.shape and out.dtype == x.dtype
    assert jnp.allclose(out, ref, rtol=1e-5, atol=1e-5), "fast path mismatch"

    # 2) same input forced through the tiled two-pass path (exercises in-kernel
    #    tail-row masking: 2 valid rows inside an 8-row tile).
    out_t = jax.block_until_ready(standardize(x, fast_path_bytes=0))
    assert jnp.allclose(out_t, ref, rtol=1e-5, atol=1e-5), "tiled path mismatch"

    # 3) small bf16 multi-tile case: native-dtype reads, 16-row sublane packing,
    #    two grid steps per pass, SMEM inv_std scalar.
    xb = jax.random.normal(jax.random.PRNGKey(1), (64, 256), dtype=jnp.bfloat16)
    out_b = jax.block_until_ready(
        standardize(xb, fast_path_bytes=0, tile_bytes=16 * 1024))
    ref_b = _reference(xb)
    assert out_b.shape == xb.shape and out_b.dtype == xb.dtype
    assert jnp.allclose(out_b.astype(jnp.float32), ref_b, rtol=5e-2, atol=5e-2), \
        "bf16 tiled path mismatch"

    print("KERNEL_OK")
</pallas_src>

<mosaic_0001>
module attributes {stable_mosaic.version = 11 : i64} {
  func.func @kernel(%arg0: i32, %arg1: memref<2x8xf32, #tpu.memory_space<vmem>>, %arg2: memref<2x8xf32, #tpu.memory_space<vmem>>) attributes {dimension_semantics = [#tpu.dimension_semantics<arbitrary>], iteration_bounds = array<i64: 1>, scalar_prefetch = 0 : i64, scratch_operands = 0 : i64, tpu.core_type = #tpu.core_type<tc>, window_params = [{pipeline_mode = #tpu.pipeline_mode<synchronous>, transform_indices = @transform_0, window_bounds = array<i64: 2, 8>}, {pipeline_mode = #tpu.pipeline_mode<synchronous>, transform_indices = @transform_1, window_bounds = array<i64: 2, 8>}]} {
    %c0 = arith.constant 0 : index
    %c0_0 = arith.constant 0 : index
    %0 = vector.load %arg1[%c0, %c0_0] : memref<2x8xf32, #tpu.memory_space<vmem>>, vector<2x8xf32>
    %cst = arith.constant dense<0.000000e+00> : vector<8xf32>
    %1 = vector.multi_reduction <add>, %0, %cst [0] : vector<2x8xf32> to vector<8xf32>
    %2 = vector.shape_cast %1 : vector<8xf32> to vector<1x8xf32>
    %3 = arith.mulf %0, %0 : vector<2x8xf32>
    %cst_1 = arith.constant dense<0.000000e+00> : vector<8xf32>
    %4 = vector.multi_reduction <add>, %3, %cst_1 [0] : vector<2x8xf32> to vector<8xf32>
    %5 = vector.shape_cast %4 : vector<8xf32> to vector<1x8xf32>
    %6 = vector.shape_cast %2 : vector<1x8xf32> to vector<1x1x8xf32>
    %cst_2 = arith.constant dense<0.000000e+00> : vector<1xf32>
    %7 = vector.multi_reduction <add>, %6, %cst_2 [1, 2] : vector<1x1x8xf32> to vector<1xf32>
    %8 = vector.shape_cast %7 : vector<1xf32> to vector<1x1x1xf32>
    %9 = vector.extract %8[0, 0, 0] : f32 from vector<1x1x1xf32>
    %10 = vector.shape_cast %5 : vector<1x8xf32> to vector<1x1x8xf32>
    %cst_3 = arith.constant dense<0.000000e+00> : vector<1xf32>
    %11 = vector.multi_reduction <add>, %10, %cst_3 [1, 2] : vector<1x1x8xf32> to vector<1xf32>
    %12 = vector.shape_cast %11 : vector<1xf32> to vector<1x1x1xf32>
    %13 = vector.extract %12[0, 0, 0] : f32 from vector<1x1x1xf32>
    %cst_4 = arith.constant 1.600000e+01 : f32
    %14 = arith.divf %9, %cst_4 : f32
    %15 = arith.mulf %9, %14 : f32
    %16 = arith.subf %13, %15 : f32
    %cst_5 = arith.constant 1.500000e+01 : f32
    %17 = arith.divf %16, %cst_5 : f32
    %cst_6 = arith.constant 0.000000e+00 : f32
    %18 = arith.maximumf %17, %cst_6 : f32
    %19 = math.rsqrt %18 : f32
    %c0_7 = arith.constant 0 : index
    %c0_8 = arith.constant 0 : index
    %20 = vector.load %arg1[%c0_7, %c0_8] : memref<2x8xf32, #tpu.memory_space<vmem>>, vector<2x8xf32>
    %21 = vector.broadcast %19 : f32 to vector<2x8xf32>
    %22 = arith.mulf %20, %21 : vector<2x8xf32>
    %c0_9 = arith.constant 0 : index
    %c0_10 = arith.constant 0 : index
    %23 = vector.load %arg2[%c0_9, %c0_10] : memref<2x8xf32, #tpu.memory_space<vmem>>, vector<2x8xf32>
    tpu.vector_store %arg2[%c0_9, %c0_10], %22 {strides = array<i32>} : memref<2x8xf32, #tpu.memory_space<vmem>>, vector<2x8xf32>,
    return
  }
  func.func @transform_0(%arg0: i32) -> (i32, i32) {
    %c0_i32 = arith.constant 0 : i32
    %c0_i32_0 = arith.constant 0 : i32
    %c0_i32_1 = arith.constant 0 : i32
    return %c0_i32, %c0_i32_0 : i32, i32
  }
  func.func @transform_1(%arg0: i32) -> (i32, i32) {
    %c0_i32 = arith.constant 0 : i32
    %c0_i32_0 = arith.constant 0 : i32
    %c0_i32_1 = arith.constant 0 : i32
    return %c0_i32, %c0_i32_0 : i32, i32
  }
}

</mosaic_0001>

<llo_original>
// kernel: tpu_custom_call.1
$region0: #{tpu_custom_call.1}
  #allocation0 [shape = 'u32[]', space=smem, size = 0x4, offset = 0x4, fixed_abs, tag = 'smem constant byte address 0x4 - core index']
  #allocation1 [shape = 'u32[144,128]{1,0:T(1,128)}', space=vmem, size = 0x12000, scoped, tag = 'internal scratch']
  %s0 = inlined_call_operand.hbm [shape: f32[2,8], index: 0, kind: input, shape index: {}]
  %s1 = inlined_call_operand.hbm [shape: f32[2,8], index: 1, kind: output, shape index: {}]
  %s2 = sld [smem:[#allocation0]]
  $region18: #{tpu_custom_call.1} parent=0
    _
  %s4 = ssub.s32 1, %s2
  %s5 = scalar_select 0, %s4, %s2
  $region1: #{tpu_custom_call.1} parent=0
    #allocation2 [shape = 'u8[1024]{0}', space=vmem, size = 0x400, scoped, tag = 'input window, operand 0, single buffered']
    #allocation3 [shape = 's32[1]{0}', space=sflag, size = 0x4, scoped, tag = 'scoped memory for tpu_custom_call.1']
    #allocation4 [shape = 's32[1]{0}', space=sflag, size = 0x4, scoped, tag = 'scoped memory for tpu_custom_call.1']
    #allocation5 [shape = 'u8[1024]{0}', space=vmem, size = 0x400, scoped, tag = 'output window, operand 0, single buffered']
    %6 = vsyncpa [#allocation3], 0
    %7 = vsyncpa [#allocation4], 0
    // Predicated region
    $region2: #{tpu_custom_call.1} parent=1 // pred_check
      _
    $region3: #{tpu_custom_call.1} parent=1 // pred_check_branch
      %9 = sbr.rel (0) target = $region5
    $region4: #{tpu_custom_call.1} parent=1 // pred_region
      %s11 = ssub.s32 32, 32
      %12 = vsyncadd [#allocation3], %s11
      %s14 = sshll.u32 [#allocation2], 4
      %s15 = int_to_ptr.vmem [resolvable:$true] %s14
      %17 = dma.hbm_to_vmem [thread:$0]  %s0, 32, %s15, [#allocation3]
    $region5: #{tpu_custom_call.1} parent=1 // pred_fallthru
      _
    // Predicated region
    $region6: #{tpu_custom_call.1} parent=1 // pred_check
      _
    $region7: #{tpu_custom_call.1} parent=1 // pred_check_branch
      %19 = sbr.rel (0) target = $region9
    $region8: #{tpu_custom_call.1} parent=1 // pred_region
      %20 = dma.done [#allocation3], 32
    $region9: #{tpu_custom_call.1} parent=1 // pred_fallthru
      _
    %v21 = vld [vmem:[#allocation2] sm:$0x3]
    %vm22 = vcmask 58368
    %v23 = vsel %vm22, %v21, 0.0
    %v24 = vrot.slane %v23, 4
    %v25 = vadd.f32 %v23, %v24
    %v26 = vrot.slane %v25, 2
    %v27 = vadd.f32 %v25, %v26
    %v28 = vrot.slane %v27, 1
    %v29 = vadd.f32 %v27, %v28
    %v30 = vmul.f32 %v21, %v21
    %v31 = vsel %vm22, %v30, 0.0
    %v32 = vrot.slane %v31, 4
    %v33 = vadd.f32 %v31, %v32
    %v34 = vrot.slane %v33, 2
    %v35 = vadd.f32 %v33, %v34
    %v36 = vrot.slane %v35, 1
    %v37 = vadd.f32 %v35, %v36
    %vm38 = vcmask 57344
    %v39 = vsel %vm38, %v29, 0.0
    %40 = vadd.xlane.f32.xlu0 %v39
    %v41 = vpop.xlane.xlu0 %40
    %v42 = vrot.slane %v41, 4
    %v43 = vadd.f32 %v41, %v42
    %v44 = vrot.slane %v43, 2
    %v45 = vadd.f32 %v43, %v44
    %v46 = vrot.slane %v45, 1
    %v47 = vadd.f32 %v45, %v46
    %s48 = vtos %v47
    %v49 = vsel %vm38, %v37, 0.0
    %50 = vadd.xlane.f32.xlu0 %v49
    %v51 = vpop.xlane.xlu0 %50
    %v52 = vrot.slane %v51, 4
    %v53 = vadd.f32 %v51, %v52
    %v54 = vrot.slane %v53, 2
    %v55 = vadd.f32 %v53, %v54
    %v56 = vrot.slane %v55, 1
    %v57 = vadd.f32 %v55, %v56
    %s58 = vtos %v57
    %v59 = vrcp.pop 16.0
    %s60 = vtos %v59
    %s61 = smul.f32 %s48, %s60
    %s62 = smul.f32 %s48, %s61
    %s63 = ssub.f32 %s58, %s62
    %v64 = vrcp.pop 15.0
    %s65 = vtos %v64
    %s66 = smul.f32 %s63, %s65
    %s67 = smax.f32 %s66, 0.0
    %v68 = vstv %s67
    %v69 = vrsqrt.pop %v68
    %s70 = vtos %v69
    %v71 = vstv %s70
    %v72 = vmul.f32 %v21, %v71
    %73 = vst.msk [vmem:[#allocation5] sm:$0x3] %vm22, %v72
    // Predicated region
    $region10: #{tpu_custom_call.1} parent=1 // pred_check
      _
    $region11: #{tpu_custom_call.1} parent=1 // pred_check_branch
      %75 = sbr.rel (0) target = $region13
    $region12: #{tpu_custom_call.1} parent=1 // pred_region
      %s77 = ssub.s32 32, 32
      %78 = vsyncadd [#allocation4], %s77
      %s80 = sshll.u32 [#allocation5], 4
      %s81 = int_to_ptr.vmem [resolvable:$true] %s80
      %83 = dma.vmem_to_hbm [thread:$0]  %s81, 32, %s1, [#allocation4]
    $region13: #{tpu_custom_call.1} parent=1 // pred_fallthru
      _
    // Predicated region
    $region14: #{tpu_custom_call.1} parent=1 // pred_check
      _
    $region15: #{tpu_custom_call.1} parent=1 // pred_check_branch
      %85 = sbr.rel (0) target = $region17
    $region16: #{tpu_custom_call.1} parent=1 // pred_region
      %86 = dma.done [#allocation4], 32
    $region17: #{tpu_custom_call.1} parent=1 // pred_fallthru
      _
    %87 = vsyncpa [#allocation3], 1
    %88 = vsyncpa [#allocation4], 1

</llo_original>
